<compile_context>
chip_gen: v7x
topology: tpu7x:2x2x1
jax: 0.10.0
libtpu: 0.0.40
codegen_flags: <defaults>
</compile_context>

<pallas_src>
import functools

import jax
import jax.numpy as jnp
from jax import lax
from jax.experimental import pallas as pl
from jax.experimental.pallas import tpu as pltpu


def _random_shift_kernel(shift_ref, x_ref, o_ref, *, batch, C, H, W, Wp):
    """shift_ref: SMEM (2*N,) int32, interleaved [sx0, sy0, sx1, sy1, ...].
       x_ref:     VMEM (batch, C, Hp, Wp) replicate-padded input block.
       o_ref:     VMEM (batch, C*H, W) output block."""
    b = pl.program_id(0)

    # Hoisted iotas for the column one-hot (only the compare depends on sx).
    q_iota = lax.broadcasted_iota(jnp.int32, (Wp, W), 0)
    j_iota = lax.broadcasted_iota(jnp.int32, (Wp, W), 1)

    def body(i, carry):
        s = b * batch + i                      # global sample index
        sx = shift_ref[2 * s]                  # shift along width  (grid x)
        sy = shift_ref[2 * s + 1]              # shift along height (grid y)

        # Row crop: dynamic sublane slice of the padded rows (no matmul).
        xr = x_ref[i, :, pl.ds(sy, H), :]      # (C, H, Wp)
        xr = xr.reshape(C * H, Wp)             # merge leading dims (layout-cheap)

        # Column crop as a single one-hot gather on the MXU.
        # sel[q, j] = [q == j + sx]; HIGHEST precision keeps the gather exact in f32.
        sel = (q_iota == j_iota + sx).astype(xr.dtype)   # (Wp, W)
        y = jnp.dot(xr, sel,
                    preferred_element_type=jnp.float32,
                    precision=lax.Precision.HIGHEST)     # (C*H, W)

        o_ref[i] = y.astype(o_ref.dtype)
        return carry

    lax.fori_loop(0, batch, body, 0, unroll=True)


def _tile_padded_bytes(rows, cols, itemsize=4):
    # VMEM footprint of a (rows, cols) f32 tile after (8, 128) tiling.
    return (-(-rows // 8) * 8) * (-(-cols // 128) * 128) * itemsize


def _choose_samples_per_block(n, c, hp, wp, h, w):
    """Pick samples-per-grid-step from a VMEM budget (double-buffered in + out)."""
    in_bytes = c * _tile_padded_bytes(hp, wp)
    out_bytes = _tile_padded_bytes(c * h, w)
    per_sample = 2 * (in_bytes + out_bytes)          # x2 for double buffering
    budget = 8 * 1024 * 1024                         # conservative for v7x (64 MiB VMEM)
    b = max(1, min(n, budget // max(per_sample, 1)))
    if n >= 2:
        b = min(b, (n + 1) // 2)                     # keep >=2 grid steps (v7x has 2 TCs)
    return int(b)


def random_shifts_aug(x, shifts, pad):
    """x: (N, C, H, W) float32; shifts: (N, 2) int32 [sx, sy] in [0, 2*pad]."""
    n, c, h, w = x.shape
    assert h == w, "RandomShiftsAug requires square images"
    hp, wp = h + 2 * pad, w + 2 * pad

    # Replicate-pad once in XLA; the kernel then only crops (no clamping needed).
    xp = jnp.pad(x, ((0, 0), (0, 0), (pad, pad), (pad, pad)), mode="edge")

    batch = _choose_samples_per_block(n, c, hp, wp, h, w)
    n_blocks = -(-n // batch)
    n_pad = n_blocks * batch
    if n_pad != n:                                   # pad the batch tail; extra rows are dropped
        xp = jnp.pad(xp, ((0, n_pad - n), (0, 0), (0, 0), (0, 0)))
        shifts = jnp.pad(shifts, ((0, n_pad - n), (0, 0)))

    # Flat 1-D int32 shift table for SMEM scalar prefetch; clip defensively to [0, 2*pad].
    shift_flat = jnp.clip(shifts, 0, 2 * pad).astype(jnp.int32).reshape(-1)

    kernel = functools.partial(_random_shift_kernel,
                               batch=batch, C=c, H=h, W=w, Wp=wp)
    out_flat = pl.pallas_call(
        kernel,
        out_shape=jax.ShapeDtypeStruct((n_pad, c * h, w), x.dtype),
        grid_spec=pltpu.PrefetchScalarGridSpec(
            num_scalar_prefetch=1,
            grid=(n_blocks,),
            in_specs=[pl.BlockSpec((batch, c, hp, wp),
                                   lambda b, shift_ref: (b, 0, 0, 0))],
            out_specs=pl.BlockSpec((batch, c * h, w),
                                   lambda b, shift_ref: (b, 0, 0)),
        ),
        compiler_params=pltpu.CompilerParams(
            dimension_semantics=("parallel",),
            vmem_limit_bytes=32 * 1024 * 1024),
    )(shift_flat, xp)

    return out_flat[:n].reshape(n, c, h, w)


def _reference(x, shifts, pad):
    """Pure-JAX reference: replicate-pad + per-sample integer crop."""
    n, c, h, w = x.shape
    xp = jnp.pad(x, ((0, 0), (0, 0), (pad, pad), (pad, pad)), mode="edge")
    outs = []
    for b in range(n):
        sx = shifts[b, 0]
        sy = shifts[b, 1]
        outs.append(jax.lax.dynamic_slice(xp[b], (0, sy, sx), (c, h, w)))
    return jnp.stack(outs, axis=0)


if __name__ == "__main__":
    pad = 4
    N, C, H, W = 2, 4, 16, 16

    key = jax.random.PRNGKey(0)
    k_x, k_shift = jax.random.split(key)
    x = jax.random.normal(k_x, (N, C, H, W), dtype=jnp.float32)
    # PyTorch draws torch.randint(0, 2*pad+1, (n,1,1,2)) then rescales to grid
    # units; the integer shift carries all the information, so it is passed
    # directly.  (Torch's RNG stream itself cannot be reproduced in JAX.)
    shifts = jax.random.randint(k_shift, (N, 2), 0, 2 * pad + 1, dtype=jnp.int32)

    out = random_shifts_aug(x, shifts, pad)
    out = jax.block_until_ready(out)

    ref = _reference(x, shifts, pad)
    assert out.shape == (N, C, H, W) and out.dtype == x.dtype
    assert jnp.allclose(out, ref, rtol=1e-6, atol=1e-6), "mismatch vs reference"

    print("KERNEL_OK")
</pallas_src>

<mosaic_0001>
module attributes {stable_mosaic.version = 11 : i64} {
  func.func @_random_shift_kernel(%arg0: i32, %arg1: memref<4xi32, #tpu.memory_space<smem>>, %arg2: memref<1x4x24x24xf32, #tpu.memory_space<vmem>>, %arg3: memref<1x64x16xf32, #tpu.memory_space<vmem>>) attributes {dimension_semantics = [#tpu.dimension_semantics<parallel>], iteration_bounds = array<i64: 2>, scalar_prefetch = 1 : i64, scratch_operands = 0 : i64, tpu.core_type = #tpu.core_type<tc>, window_params = [{transform_indices = @transform_0, window_bounds = array<i64: 1, 4, 24, 24>}, {transform_indices = @transform_1, window_bounds = array<i64: 1, 64, 16>}]} {
    %0 = tpu.iota {dimensions = array<i32: 0>} : vector<24x16xi32>
    %1 = tpu.iota {dimensions = array<i32: 1>} : vector<24x16xi32>
    %c0_i32 = arith.constant 0 : i32
    %c1_i32 = arith.constant 1 : i32
    %2 = arith.muli %arg0, %c1_i32 : i32
    %3 = arith.addi %2, %c0_i32 : i32
    %c2_i32 = arith.constant 2 : i32
    %4 = arith.muli %c2_i32, %3 : i32
    %5 = arith.index_cast %4 : i32 to index
    %6 = memref.load %arg1[%5] : memref<4xi32, #tpu.memory_space<smem>>
    %c2_i32_0 = arith.constant 2 : i32
    %7 = arith.muli %c2_i32_0, %3 : i32
    %c1_i32_1 = arith.constant 1 : i32
    %8 = arith.addi %7, %c1_i32_1 : i32
    %9 = arith.index_cast %8 : i32 to index
    %10 = memref.load %arg1[%9] : memref<4xi32, #tpu.memory_space<smem>>
    %11 = arith.index_cast %c0_i32 : i32 to index
    %c0 = arith.constant 0 : index
    %12 = arith.index_cast %10 : i32 to index
    %c0_2 = arith.constant 0 : index
    %13 = vector.load %arg2[%11, %c0, %12, %c0_2] : memref<1x4x24x24xf32, #tpu.memory_space<vmem>>, vector<1x4x16x24xf32>
    %14 = vector.shape_cast %13 : vector<1x4x16x24xf32> to vector<4x16x24xf32>
    %15 = vector.shape_cast %14 : vector<4x16x24xf32> to vector<64x24xf32>
    %16 = vector.broadcast %6 : i32 to vector<24x16xi32>
    %17 = arith.addi %1, %16 : vector<24x16xi32>
    %18 = arith.cmpi eq, %0, %17 : vector<24x16xi32>
    %19 = arith.extui %18 : vector<24x16xi1> to vector<24x16xi32>
    %20 = arith.sitofp %19 : vector<24x16xi32> to vector<24x16xf32>
    %cst = arith.constant dense<0.000000e+00> : vector<64x16xf32>
    %21 = tpu.matmul %15, %20, %cst {dimension_numbers = #tpu.dot_dimension_numbers<[1], [0], [0], [1], [0, 0, 1, 1], [], []>, precision = #tpu.contract_precision<fp32>} : vector<64x24xf32>, vector<24x16xf32>, vector<64x16xf32> -> vector<64x16xf32>
    %22 = arith.index_cast %c0_i32 : i32 to index
    %c0_3 = arith.constant 0 : index
    %c0_4 = arith.constant 0 : index
    %23 = vector.load %arg3[%22, %c0_3, %c0_4] : memref<1x64x16xf32, #tpu.memory_space<vmem>>, vector<1x64x16xf32>
    %24 = vector.shape_cast %23 : vector<1x64x16xf32> to vector<64x16xf32>
    %25 = vector.shape_cast %21 : vector<64x16xf32> to vector<1x64x16xf32>
    tpu.vector_store %arg3[%22, %c0_3, %c0_4], %25 {strides = array<i32>} : memref<1x64x16xf32, #tpu.memory_space<vmem>>, vector<1x64x16xf32>,
    %c1_i32_5 = arith.constant 1 : i32
    return
  }
  func.func @transform_0(%arg0: i32, %arg1: memref<4xi32, #tpu.memory_space<smem>>) -> (i32, i32, i32, i32) {
    %c0_i32 = arith.constant 0 : i32
    %c0_i32_0 = arith.constant 0 : i32
    %c0_i32_1 = arith.constant 0 : i32
    %c0_i32_2 = arith.constant 0 : i32
    return %arg0, %c0_i32, %c0_i32_0, %c0_i32_1 : i32, i32, i32, i32
  }
  func.func @transform_1(%arg0: i32, %arg1: memref<4xi32, #tpu.memory_space<smem>>) -> (i32, i32, i32) {
    %c0_i32 = arith.constant 0 : i32
    %c0_i32_0 = arith.constant 0 : i32
    %c0_i32_1 = arith.constant 0 : i32
    return %arg0, %c0_i32, %c0_i32_0 : i32, i32, i32
  }
}

</mosaic_0001>

<llo_original>
// kernel: tpu_custom_call.1
$region0: #{tpu_custom_call.1}
  #allocation0 [shape = 'u32[]', space=smem, size = 0x4, offset = 0x4, fixed_abs, tag = 'smem constant byte address 0x4 - core index']
  #allocation1 [shape = 'u32[144,128]{1,0:T(1,128)}', space=vmem, size = 0x12000, scoped, tag = 'internal scratch']
  #allocation2 [shape = 's32[1]{0}', space=sflag, size = 0x4, scoped, tag = 'scoped memory for tpu_custom_call.1']
  #allocation3 [shape = 'u8[512]{0}', space=smem, size = 0x200, scoped, tag = 'prefetched SMEM operand 0']
  %s0 = inlined_call_operand.hbm [shape: s32[4], index: 0, kind: input, shape index: {}]
  %s1 = inlined_call_operand.hbm [shape: f32[2,4,24,24], index: 1, kind: input, shape index: {}]
  %s2 = inlined_call_operand.vmem [shape: f32[2,64,16], index: 2, kind: output, shape index: {}]
  %s3 = sld [smem:[#allocation0]]
  $region41: #{tpu_custom_call.1} parent=0
    _
  %s5 = ssub.s32 1, %s3
  %s6 = scalar_select 0, %s5, %s3
  %8 = dma.hbm_to_smem %s0, 16, [#allocation3], [#allocation2]
  %9 = dma.done [#allocation2], 16
  %10 = sfence
  $region1: #{tpu_custom_call.1} parent=0
    #allocation4 [shape = 'u8[98304]{0}', space=vmem, size = 0x18000, scoped, tag = 'input window, operand 1']
    #allocation5 [shape = 's32[2]{0}', space=sflag, size = 0x8, scoped, tag = 'scoped memory for tpu_custom_call.1']
    %11 = vsyncpa [#allocation5], 0
    %s12 = scalar_lea.sflag [#allocation5], 1
    %13 = vsyncpa %s12, 0
    loop: start=0, step=1, limit=4
    $region2: #{tpu_custom_call.1} parent=1 // loop_pre_header
      _
    $region3: #{tpu_custom_call.1} parent=1 // loop_header
      %s15 = sphi 0, %s19
      %p16 = scmp.ge.s32.totalorder %s15, 4
      %s25 = sphi 0, %s27
      %s28 = sphi 0, %s25
      %s29 = sphi 0, %s28
      %s45 = sphi 0, %s29
      %s51 = sphi 0, %s53
      %s54 = sphi 0, %s51
      %s55 = sphi 0, %s54
      %s71 = sphi 0, %s55
    $region4: #{tpu_custom_call.1} parent=1 // loop_header_branch
      %18 = sbr.rel (%p16) target = $region8
    $region5: #{tpu_custom_call.1} parent=1 // loop_body
      %s20 = ssub.s32 %s15, 1
      %s21 = ssub.s32 %s15, 2
      %s22 = sadd.s32 %s15, 1
      %s23 = ssub.s32 %s15, %s22
      %p24 = scmp.eq.s32.totalorder %s23, 0
      %s26 = sadd.s32 %s25, 1
      %s27 = scalar_select %p24, %s25, %s26
      %p30 = pneg %p24
      %p31 = scmp.eq.s32.totalorder %s15, 1
      %p32 = por %p30, %p31
      %p33 = scmp.ne.s32.totalorder %s25, %s28
      %p34 = scmp.eq.s32.totalorder %s15, 0
      %p35 = por %p33, %p34
      %p36 = scmp.ne.s32.totalorder %s25, %s28
      %p37 = scmp.eq.s32.totalorder %s20, 1
      %p38 = por %p36, %p37
      %p39 = scmp.ne.s32.totalorder %s28, %s29
      %p40 = scmp.eq.s32.totalorder %s20, 0
      %p41 = por %p39, %p40
      %p42 = scmp.ne.s32.totalorder %s28, %s29
      %p43 = scmp.eq.s32.totalorder %s21, 1
      %p44 = por %p42, %p43
      %p46 = scmp.ne.s32.totalorder %s29, %s45
      %p47 = scmp.eq.s32.totalorder %s21, 0
      %p48 = por %p46, %p47
      %s49 = ssub.s32 %s15, %s22
      %p50 = scmp.eq.s32.totalorder %s49, 0
      %s52 = sadd.s32 %s51, 1
      %s53 = scalar_select %p50, %s51, %s52
      %p56 = pneg %p50
      %p57 = scmp.eq.s32.totalorder %s15, 1
      %p58 = por %p56, %p57
      %p59 = scmp.ne.s32.totalorder %s51, %s54
      %p60 = scmp.eq.s32.totalorder %s15, 0
      %p61 = por %p59, %p60
      %p62 = scmp.ne.s32.totalorder %s51, %s54
      %p63 = scmp.eq.s32.totalorder %s20, 1
      %p64 = por %p62, %p63
      %p65 = scmp.ne.s32.totalorder %s54, %s55
      %p66 = scmp.eq.s32.totalorder %s20, 0
      %p67 = por %p65, %p66
      %p68 = scmp.ne.s32.totalorder %s54, %s55
      %p69 = scmp.eq.s32.totalorder %s21, 1
      %p70 = por %p68, %p69
      %p72 = scmp.ne.s32.totalorder %s55, %s71
      %p73 = scmp.eq.s32.totalorder %s21, 0
      %p74 = por %p72, %p73
      %p75 = scmp.le.s32.totalorder 1, %s15
      %p76 = scmp.lt.s32.totalorder %s15, 3
      %p77 = pnand %p75, %p76
      %p78 = pneg %p77
      // Predicated region
      $region9: #{tpu_custom_call.1} parent=5 // pred_check
        _
      $region10: #{tpu_custom_call.1} parent=5 // pred_check_branch
        %80 = sbr.rel (%p77) target = $region12
      $region11: #{tpu_custom_call.1} parent=5 // pred_region
        %s81 = ssub.s32 %s15, 1
      $region12: #{tpu_custom_call.1} parent=5 // pred_fallthru
        _
      %p82 = scmp.lt.s32.totalorder %s15, 2
      // Predicated region
      $region13: #{tpu_custom_call.1} parent=5 // pred_check
        %p83 = pneg %p82
      $region14: #{tpu_custom_call.1} parent=5 // pred_check_branch
        %85 = sbr.rel (%p83) target = $region16
      $region15: #{tpu_custom_call.1} parent=5 // pred_region
        // Predicated region
        $region17: #{tpu_custom_call.1} parent=15 // pred_check
          %p86 = pneg %p35
        $region18: #{tpu_custom_call.1} parent=15 // pred_check_branch
          %88 = sbr.rel (%p86) target = $region20
        $region19: #{tpu_custom_call.1} parent=15 // pred_region
          %s89 = sand.u32 %s25, 1
          %s90 = scalar_lea.sflag [#allocation5], %s89
          %s91 = sand.u32 %s25, 1
          %s92 = smul.addr %s91, 96
          %s93 = scalar_lea.vmem [#allocation4], %s92
          %s95 = ssub.s32 1536, 1536
          %96 = vsyncadd %s90, %s95
          %s97 = smul.addr %s15, 12
          %s98 = smul.addr %s97, 128
          %s99 = scalar_lea.hbm %s1, %s98
          %s100 = sshll.u32 %s93, 4
          %s101 = int_to_ptr.vmem [resolvable:$true] %s100
          %106 = dma.hbm_to_vmem [thread:$0]  %s99, 1536, %s101, %s90, 128, 128, 8
        $region20: #{tpu_custom_call.1} parent=15 // pred_fallthru
          _
      $region16: #{tpu_custom_call.1} parent=5 // pred_fallthru
        _
      %p107 = scmp.le.s32.totalorder 1, %s15
      %p108 = scmp.lt.s32.totalorder %s15, 3
      %p109 = pnand %p107, %p108
      %p110 = pneg %p109
      // Predicated region
      $region21: #{tpu_custom_call.1} parent=5 // pred_check
        _
      $region22: #{tpu_custom_call.1} parent=5 // pred_check_branch
        %112 = sbr.rel (%p109) target = $region24
      $region23: #{tpu_custom_call.1} parent=5 // pred_region
        %s113 = ssub.s32 %s15, 1
        %s114 = sand.u32 %s28, 1
        %s115 = scalar_lea.sflag [#allocation5], %s114
        %s116 = sand.u32 %s28, 1
        %s117 = smul.addr %s116, 96
        %s118 = scalar_lea.vmem [#allocation4], %s117
        // Predicated region
        $region25: #{tpu_custom_call.1} parent=23 // pred_check
          %p119 = pneg %p41
        $region26: #{tpu_custom_call.1} parent=23 // pred_check_branch
          %121 = sbr.rel (%p119) target = $region28
        $region27: #{tpu_custom_call.1} parent=23 // pred_region
          %122 = dma.done %s115, 1536
        $region28: #{tpu_custom_call.1} parent=23 // pred_fallthru
          _
        %s123 = sand.u32 %s28, 1
        %s124 = scalar_lea.sflag [#allocation5], %s123
        %s125 = sand.u32 %s28, 1
        %s126 = smul.addr %s125, 96
        %s127 = scalar_lea.vmem [#allocation4], %s126
        %p128 = pneg %p41
        %p129 = pneg %p38
        %p130 = pneg %p67
        %p131 = pneg %p64
        %p132 = scmp.lt.s32.totalorder %s20, 1
        %s133 = scalar_select %p132, %s20, 1
        %s134 = smul.addr %s133, 8
        %s135 = smul.addr %s134, 8
        %s136 = scalar_lea.vmem %s2, %s135
        %p137 = scmp.lt.s32.totalorder %s20, 1
        %s138 = scalar_select %p137, %s20, 1
        %s139 = smul.addr %s138, 8
        %s140 = smul.addr %s139, 8
        %s141 = scalar_lea.vmem %s2, %s140
        %v142 = vlaneseq
        %v143 = vshrl.u32 %v142, 7
        %v144 = vadd.s32 %v143, 8
        %v145 = vadd.s32 %v143, 16
        %v146 = vlaneseq
        %v147 = vand.u32 %v146, 127
        %s148 = smul.u32 %s20, 2
        %s149 = sld [smem:[#allocation3 + %s148]]
        %s150 = sadd.s32 %s148, 1
        %s151 = sld [smem:[#allocation3 + %s150]]
        %s152 = scalar_lea.vmem %s118, %s151 [#allocation4]
        %v153 = vld [vmem:[%s152] sm:$0xff]
        %v154 = vld [vmem:[%s152 + $0x8] sm:$0xff]
        %v155 = vld [vmem:[%s152 + $0x18] sm:$0xff]
        %v156 = vld [vmem:[%s152 + $0x20] sm:$0xff]
        %v157 = vld [vmem:[%s152 + $0x30] sm:$0xff]
        %v158 = vld [vmem:[%s152 + $0x38] sm:$0xff]
        %v159 = vld [vmem:[%s152 + $0x48] sm:$0xff]
        %v160 = vld [vmem:[%s152 + $0x50] sm:$0xff]
        %v161 = vstv %s149
        %v162 = vadd.s32 %v147, %v161
        %vm163 = vcmp.eq.s32.totalorder %v143, %v162
        %vm164 = vcmp.eq.s32.totalorder %v144, %v162
        %vm165 = vcmp.eq.s32.totalorder %v145, %v162
        %v166 = vsel %vm163, 1, 0
        %v167 = vsel %vm164, 1, 0
        %v168 = vsel %vm165, 1, 0
        %v169 = vcvt.s32.f32 %v166
        %v170 = vcvt.s32.f32 %v167
        %v171 = vcvt.s32.f32 %v168
        %vm172 = vcmask 195584
        %v174 = vsel %vm172, %v153, 0
        %v177 = vsel %vm172, %v154, 0
        %v180 = vsel %vm172, %v155, 0
        %v183 = vsel %vm172, %v156, 0
        %v186 = vsel %vm172, %v157, 0
        %v189 = vsel %vm172, %v158, 0
        %v192 = vsel %vm172, %v159, 0
        %v195 = vsel %vm172, %v160, 0
        %197 = vmatprep.subr.mxu0 0.0
        %v198 = vand.u32 %v169, 4294901760
        %199 = vmatpush1.msra.mxu0 %v198
        %200 = vmatprep.subr.mxu0 0.0
        %v201 = vand.u32 %v170, 4294901760
        %202 = vmatpush1.msra.mxu0 %v201
        %203 = vmatprep.subr.mxu0 0.0
        %v204 = vand.u32 %v171, 4294901760
        %205 = vmatpush1.msra.mxu0 %v204
        %206 = vmatprep.subr.mxu0 0.0
        %207 = vmatpush1.msra.mxu0 0.0
        %208 = vmatprep.subr.mxu0 0.0
        %209 = vmatpush1.msra.mxu0 0.0
        %210 = vmatprep.subr.mxu0 0.0
        %211 = vmatpush1.msra.mxu0 0.0
        %212 = vmatprep.subr.mxu0 0.0
        %213 = vmatpush1.msra.mxu0 0.0
        %214 = vmatprep.subr.mxu0 0.0
        %215 = vmatpush1.msra.mxu0 0.0
        %216 = vmatprep.subr.mxu0 0.0
        %217 = vmatpush1.msra.mxu0 0.0
        %218 = vmatprep.subr.mxu0 0.0
        %219 = vmatpush1.msra.mxu0 0.0
        %220 = vmatprep.subr.mxu0 0.0
        %221 = vmatpush1.msra.mxu0 0.0
        %222 = vmatprep.subr.mxu0 0.0
        %223 = vmatpush1.msra.mxu0 0.0
        %224 = vmatprep.subr.mxu0 0.0
        %225 = vmatpush1.msra.mxu0 0.0
        %226 = vmatprep.subr.mxu0 0.0
        %227 = vmatpush1.msra.mxu0 0.0
        %228 = vmatprep.subr.mxu0 0.0
        %229 = vmatpush1.msra.mxu0 0.0
        %230 = vmatprep.subr.mxu0 0.0
        %231 = vmatpush1.msra.mxu0 0.0
        %232 = vmatprep.subr.mxu0 0.0
        %233 = vmatpush1.msra.mxu0 0.0
        %234 = vmatprep.subr.mxu0 0.0
        %235 = vmatpush1.msra.mxu0 0.0
        %236 = vmatprep.subr.mxu0 0.0
        %237 = vmatpush1.msra.mxu0 0.0
        %238 = vmatprep.subr.mxu0 0.0
        %239 = vmatpush1.msra.mxu0 0.0
        %240 = vmatprep.subr.mxu0 0.0
        %241 = vmatpush1.msra.mxu0 0.0
        %242 = vmatprep.subr.mxu0 0.0
        %243 = vmatpush1.msra.mxu0 0.0
        %244 = vmatprep.subr.mxu0 0.0
        %245 = vmatpush1.msra.mxu0 0.0
        %246 = vmatprep.subr.mxu0 0.0
        %247 = vmatpush1.msra.mxu0 0.0
        %248 = vmatprep.subr.mxu0 0.0
        %249 = vmatpush1.msra.mxu0 0.0
        %250 = vmatprep.subr.mxu0 0.0
        %251 = vmatpush1.msra.mxu0 0.0
        %252 = vmatprep.subr.mxu0 0.0
        %253 = vmatpush1.msra.mxu0 0.0
        %254 = vmatprep.subr.mxu0 0.0
        %255 = vmatpush1.msra.mxu0 0.0
        %256 = vmatprep.subr.mxu0 0.0
        %257 = vmatpush1.msra.mxu0 0.0
        %258 = vmatprep.subr.mxu0 0.0
        %259 = vmatpush1.msra.mxu0 0.0
        %260 = vmatprep.subr.mxu0 0.0
        %261 = vmatpush1.msra.mxu0 0.0
        %262 = vmatprep.subr.mxu0 0.0
        %263 = vmatpush1.msra.mxu0 0.0
        %264 = vmatprep.mubr.f32.mxu0 0.0
        %v265 = vand.u32 %v174, 4294901760
        %v266 = vsub.f32 %v174, %v265
        %v267 = vand.u32 %v266, 4294901760
        %v268 = vsub.f32 %v266, %v267
        %v269 = vand.u32 %v268, 4294901760
        %270 = vmatmul.mubr.f32.gmra.mrb[0].mxu0 %v269
        %v271 = vpop.f32.mrb[0].mxu0
        %v272 = vadd.f32 0.0, %v271
        %v273 = vpop.f32.mrb[0].mxu0
        %274 = vmatprep.mubr.f32.mxu0 0.0
        %v275 = vand.u32 %v177, 4294901760
        %v276 = vsub.f32 %v177, %v275
        %v277 = vand.u32 %v276, 4294901760
        %v278 = vsub.f32 %v276, %v277
        %v279 = vand.u32 %v278, 4294901760
        %280 = vmatmul.mubr.f32.gmra.mrb[0].mxu0 %v279
        %v281 = vpop.f32.mrb[0].mxu0
        %v282 = vadd.f32 0.0, %v281
        %v283 = vpop.f32.mrb[0].mxu0
        %284 = vmatprep.mubr.f32.mxu0 0.0
        %v285 = vand.u32 %v180, 4294901760
        %v286 = vsub.f32 %v180, %v285
        %v287 = vand.u32 %v286, 4294901760
        %v288 = vsub.f32 %v286, %v287
        %v289 = vand.u32 %v288, 4294901760
        %290 = vmatmul.mubr.f32.gmra.mrb[0].mxu0 %v289
        %v291 = vpop.f32.mrb[0].mxu0
        %v292 = vadd.f32 0.0, %v291
        %v293 = vpop.f32.mrb[0].mxu0
        %294 = vmatprep.mubr.f32.mxu0 0.0
        %v295 = vand.u32 %v183, 4294901760
        %v296 = vsub.f32 %v183, %v295
        %v297 = vand.u32 %v296, 4294901760
        %v298 = vsub.f32 %v296, %v297
        %v299 = vand.u32 %v298, 4294901760
        %300 = vmatmul.mubr.f32.gmra.mrb[0].mxu0 %v299
        %v301 = vpop.f32.mrb[0].mxu0
        %v302 = vadd.f32 0.0, %v301
        %v303 = vpop.f32.mrb[0].mxu0
        %304 = vmatprep.mubr.f32.mxu0 0.0
        %v305 = vand.u32 %v186, 4294901760
        %v306 = vsub.f32 %v186, %v305
        %v307 = vand.u32 %v306, 4294901760
        %v308 = vsub.f32 %v306, %v307
        %v309 = vand.u32 %v308, 4294901760
        %310 = vmatmul.mubr.f32.gmra.mrb[0].mxu0 %v309
        %v311 = vpop.f32.mrb[0].mxu0
        %v312 = vadd.f32 0.0, %v311
        %v313 = vpop.f32.mrb[0].mxu0
        %314 = vmatprep.mubr.f32.mxu0 0.0
        %v315 = vand.u32 %v189, 4294901760
        %v316 = vsub.f32 %v189, %v315
        %v317 = vand.u32 %v316, 4294901760
        %v318 = vsub.f32 %v316, %v317
        %v319 = vand.u32 %v318, 4294901760
        %320 = vmatmul.mubr.f32.gmra.mrb[0].mxu0 %v319
        %v321 = vpop.f32.mrb[0].mxu0
        %v322 = vadd.f32 0.0, %v321
        %v323 = vpop.f32.mrb[0].mxu0
        %324 = vmatprep.mubr.f32.mxu0 0.0
        %v325 = vand.u32 %v192, 4294901760
        %v326 = vsub.f32 %v192, %v325
        %v327 = vand.u32 %v326, 4294901760
        %v328 = vsub.f32 %v326, %v327
        %v329 = vand.u32 %v328, 4294901760
        %330 = vmatmul.mubr.f32.gmra.mrb[0].mxu0 %v329
        %v331 = vpop.f32.mrb[0].mxu0
        %v332 = vadd.f32 0.0, %v331
        %v333 = vpop.f32.mrb[0].mxu0
        %334 = vmatprep.mubr.f32.mxu0 0.0
        %v335 = vand.u32 %v195, 4294901760
        %v336 = vsub.f32 %v195, %v335
        %v337 = vand.u32 %v336, 4294901760
        %v338 = vsub.f32 %v336, %v337
        %v339 = vand.u32 %v338, 4294901760
        %340 = vmatmul.mubr.f32.gmra.mrb[0].mxu0 %v339
        %v341 = vpop.f32.mrb[0].mxu0
        %v342 = vadd.f32 0.0, %v341
        %v343 = vpop.f32.mrb[0].mxu0
        %344 = vdwg.mxu0
        %345 = vmatprep.subr.mxu0 0.0
        %v346 = vand.u32 %v169, 4294901760
        %v347 = vsub.f32 %v169, %v346
        %v348 = vand.u32 %v347, 4294901760
        %v349 = vsub.f32 %v347, %v348
        %v350 = vand.u32 %v349, 4294901760
        %351 = vmatpush1.msra.mxu0 %v350
        %352 = vmatprep.subr.mxu0 0.0
        %v353 = vand.u32 %v170, 4294901760
        %v354 = vsub.f32 %v170, %v353
        %v355 = vand.u32 %v354, 4294901760
        %v356 = vsub.f32 %v354, %v355
        %v357 = vand.u32 %v356, 4294901760
        %358 = vmatpush1.msra.mxu0 %v357
        %359 = vmatprep.subr.mxu0 0.0
        %v360 = vand.u32 %v171, 4294901760
        %v361 = vsub.f32 %v171, %v360
        %v362 = vand.u32 %v361, 4294901760
        %v363 = vsub.f32 %v361, %v362
        %v364 = vand.u32 %v363, 4294901760
        %365 = vmatpush1.msra.mxu0 %v364
        %366 = vmatprep.subr.mxu0 0.0
        %367 = vmatpush1.msra.mxu0 0.0
        %368 = vmatprep.subr.mxu0 0.0
        %369 = vmatpush1.msra.mxu0 0.0
        %370 = vmatprep.subr.mxu0 0.0
        %371 = vmatpush1.msra.mxu0 0.0
        %372 = vmatprep.subr.mxu0 0.0
        %373 = vmatpush1.msra.mxu0 0.0
        %374 = vmatprep.subr.mxu0 0.0
        %375 = vmatpush1.msra.mxu0 0.0
        %376 = vmatprep.subr.mxu0 0.0
        %377 = vmatpush1.msra.mxu0 0.0
        %378 = vmatprep.subr.mxu0 0.0
        %379 = vmatpush1.msra.mxu0 0.0
        %380 = vmatprep.subr.mxu0 0.0
        %381 = vmatpush1.msra.mxu0 0.0
        %382 = vmatprep.subr.mxu0 0.0
        %383 = vmatpush1.msra.mxu0 0.0
        %384 = vmatprep.subr.mxu0 0.0
        %385 = vmatpush1.msra.mxu0 0.0
        %386 = vmatprep.subr.mxu0 0.0
        %387 = vmatpush1.msra.mxu0 0.0
        %388 = vmatprep.subr.mxu0 0.0
        %389 = vmatpush1.msra.mxu0 0.0
        %390 = vmatprep.subr.mxu0 0.0
        %391 = vmatpush1.msra.mxu0 0.0
        %392 = vmatprep.subr.mxu0 0.0
        %393 = vmatpush1.msra.mxu0 0.0
        %394 = vmatprep.subr.mxu0 0.0
        %395 = vmatpush1.msra.mxu0 0.0
        %396 = vmatprep.subr.mxu0 0.0
        %397 = vmatpush1.msra.mxu0 0.0
        %398 = vmatprep.subr.mxu0 0.0
        %399 = vmatpush1.msra.mxu0 0.0
        %400 = vmatprep.subr.mxu0 0.0
        %401 = vmatpush1.msra.mxu0 0.0
        %402 = vmatprep.subr.mxu0 0.0
        %403 = vmatpush1.msra.mxu0 0.0
        %404 = vmatprep.subr.mxu0 0.0
        %405 = vmatpush1.msra.mxu0 0.0
        %406 = vmatprep.subr.mxu0 0.0
        %407 = vmatpush1.msra.mxu0 0.0
        %408 = vmatprep.subr.mxu0 0.0
        %409 = vmatpush1.msra.mxu0 0.0
        %410 = vmatprep.subr.mxu0 0.0
        %411 = vmatpush1.msra.mxu0 0.0
        %412 = vmatprep.subr.mxu0 0.0
        %413 = vmatpush1.msra.mxu0 0.0
        %414 = vmatprep.subr.mxu0 0.0
        %415 = vmatpush1.msra.mxu0 0.0
        %416 = vmatprep.subr.mxu0 0.0
        %417 = vmatpush1.msra.mxu0 0.0
        %418 = vmatprep.subr.mxu0 0.0
        %419 = vmatpush1.msra.mxu0 0.0
        %420 = vmatprep.subr.mxu0 0.0
        %421 = vmatpush1.msra.mxu0 0.0
        %422 = vmatprep.subr.mxu0 0.0
        %423 = vmatpush1.msra.mxu0 0.0
        %424 = vmatprep.mubr.f32.mxu0 0.0
        %v425 = vand.u32 %v174, 4294901760
        %426 = vmatmul.mubr.f32.gmra.mrb[0].mxu0 %v425
        %v427 = vpop.f32.mrb[0].mxu0
        %v428 = vadd.f32 %v272, %v427
        %v429 = vpop.f32.mrb[0].mxu0
        %430 = vmatprep.mubr.f32.mxu0 0.0
        %v431 = vand.u32 %v177, 4294901760
        %432 = vmatmul.mubr.f32.gmra.mrb[0].mxu0 %v431
        %v433 = vpop.f32.mrb[0].mxu0
        %v434 = vadd.f32 %v282, %v433
        %v435 = vpop.f32.mrb[0].mxu0
        %436 = vmatprep.mubr.f32.mxu0 0.0
        %v437 = vand.u32 %v180, 4294901760
        %438 = vmatmul.mubr.f32.gmra.mrb[0].mxu0 %v437
        %v439 = vpop.f32.mrb[0].mxu0
        %v440 = vadd.f32 %v292, %v439
        %v441 = vpop.f32.mrb[0].mxu0
        %442 = vmatprep.mubr.f32.mxu0 0.0
        %v443 = vand.u32 %v183, 4294901760
        %444 = vmatmul.mubr.f32.gmra.mrb[0].mxu0 %v443
        %v445 = vpop.f32.mrb[0].mxu0
        %v446 = vadd.f32 %v302, %v445
        %v447 = vpop.f32.mrb[0].mxu0
        %448 = vmatprep.mubr.f32.mxu0 0.0
        %v449 = vand.u32 %v186, 4294901760
        %450 = vmatmul.mubr.f32.gmra.mrb[0].mxu0 %v449
        %v451 = vpop.f32.mrb[0].mxu0
        %v452 = vadd.f32 %v312, %v451
        %v453 = vpop.f32.mrb[0].mxu0
        %454 = vmatprep.mubr.f32.mxu0 0.0
        %v455 = vand.u32 %v189, 4294901760
        %456 = vmatmul.mubr.f32.gmra.mrb[0].mxu0 %v455
        %v457 = vpop.f32.mrb[0].mxu0
        %v458 = vadd.f32 %v322, %v457
        %v459 = vpop.f32.mrb[0].mxu0
        %460 = vmatprep.mubr.f32.mxu0 0.0
        %v461 = vand.u32 %v192, 4294901760
        %462 = vmatmul.mubr.f32.gmra.mrb[0].mxu0 %v461
        %v463 = vpop.f32.mrb[0].mxu0
        %v464 = vadd.f32 %v332, %v463
        %v465 = vpop.f32.mrb[0].mxu0
        %466 = vmatprep.mubr.f32.mxu0 0.0
        %v467 = vand.u32 %v195, 4294901760
        %468 = vmatmul.mubr.f32.gmra.mrb[0].mxu0 %v467
        %v469 = vpop.f32.mrb[0].mxu0
        %v470 = vadd.f32 %v342, %v469
        %v471 = vpop.f32.mrb[0].mxu0
        %472 = vdwg.mxu0
        %473 = vmatprep.subr.mxu0 0.0
        %v474 = vand.u32 %v169, 4294901760
        %v475 = vsub.f32 %v169, %v474
        %476 = vmatpush1.msra.mxu0 %v475
        %477 = vmatprep.subr.mxu0 0.0
        %v478 = vand.u32 %v170, 4294901760
        %v479 = vsub.f32 %v170, %v478
        %480 = vmatpush1.msra.mxu0 %v479
        %481 = vmatprep.subr.mxu0 0.0
        %v482 = vand.u32 %v171, 4294901760
        %v483 = vsub.f32 %v171, %v482
        %484 = vmatpush1.msra.mxu0 %v483
        %485 = vmatprep.subr.mxu0 0.0
        %486 = vmatpush1.msra.mxu0 0.0
        %487 = vmatprep.subr.mxu0 0.0
        %488 = vmatpush1.msra.mxu0 0.0
        %489 = vmatprep.subr.mxu0 0.0
        %490 = vmatpush1.msra.mxu0 0.0
        %491 = vmatprep.subr.mxu0 0.0
        %492 = vmatpush1.msra.mxu0 0.0
        %493 = vmatprep.subr.mxu0 0.0
        %494 = vmatpush1.msra.mxu0 0.0
        %495 = vmatprep.subr.mxu0 0.0
        %496 = vmatpush1.msra.mxu0 0.0
        %497 = vmatprep.subr.mxu0 0.0
        %498 = vmatpush1.msra.mxu0 0.0
        %499 = vmatprep.subr.mxu0 0.0
        %500 = vmatpush1.msra.mxu0 0.0
        %501 = vmatprep.subr.mxu0 0.0
        %502 = vmatpush1.msra.mxu0 0.0
        %503 = vmatprep.subr.mxu0 0.0
        %504 = vmatpush1.msra.mxu0 0.0
        %505 = vmatprep.subr.mxu0 0.0
        %506 = vmatpush1.msra.mxu0 0.0
        %507 = vmatprep.subr.mxu0 0.0
        %508 = vmatpush1.msra.mxu0 0.0
        %509 = vmatprep.subr.mxu0 0.0
        %510 = vmatpush1.msra.mxu0 0.0
        %511 = vmatprep.subr.mxu0 0.0
        %512 = vmatpush1.msra.mxu0 0.0
        %513 = vmatprep.subr.mxu0 0.0
        %514 = vmatpush1.msra.mxu0 0.0
        %515 = vmatprep.subr.mxu0 0.0
        %516 = vmatpush1.msra.mxu0 0.0
        %517 = vmatprep.subr.mxu0 0.0
        %518 = vmatpush1.msra.mxu0 0.0
        %519 = vmatprep.subr.mxu0 0.0
        %520 = vmatpush1.msra.mxu0 0.0
        %521 = vmatprep.subr.mxu0 0.0
        %522 = vmatpush1.msra.mxu0 0.0
        %523 = vmatprep.subr.mxu0 0.0
        %524 = vmatpush1.msra.mxu0 0.0
        %525 = vmatprep.subr.mxu0 0.0
        %526 = vmatpush1.msra.mxu0 0.0
        %527 = vmatprep.subr.mxu0 0.0
        %528 = vmatpush1.msra.mxu0 0.0
        %529 = vmatprep.subr.mxu0 0.0
        %530 = vmatpush1.msra.mxu0 0.0
        %531 = vmatprep.subr.mxu0 0.0
        %532 = vmatpush1.msra.mxu0 0.0
        %533 = vmatprep.subr.mxu0 0.0
        %534 = vmatpush1.msra.mxu0 0.0
        %535 = vmatprep.subr.mxu0 0.0
        %536 = vmatpush1.msra.mxu0 0.0
        %537 = vmatprep.subr.mxu0 0.0
        %538 = vmatpush1.msra.mxu0 0.0
        %539 = vmatprep.subr.mxu0 0.0
        %540 = vmatpush1.msra.mxu0 0.0
        %541 = vmatprep.subr.mxu0 0.0
        %542 = vmatpush1.msra.mxu0 0.0
        %543 = vmatprep.mubr.f32.mxu0 0.0
        %v544 = vand.u32 %v174, 4294901760
        %v545 = vsub.f32 %v174, %v544
        %546 = vmatmul.mubr.f32.gmra.mrb[0].mxu0 %v545
        %v547 = vpop.f32.mrb[0].mxu0
        %v548 = vadd.f32 %v428, %v547
        %v549 = vpop.f32.mrb[0].mxu0
        %550 = vmatprep.mubr.f32.mxu0 0.0
        %v551 = vand.u32 %v177, 4294901760
        %v552 = vsub.f32 %v177, %v551
        %553 = vmatmul.mubr.f32.gmra.mrb[0].mxu0 %v552
        %v554 = vpop.f32.mrb[0].mxu0
        %v555 = vadd.f32 %v434, %v554
        %v556 = vpop.f32.mrb[0].mxu0
        %557 = vmatprep.mubr.f32.mxu0 0.0
        %v558 = vand.u32 %v180, 4294901760
        %v559 = vsub.f32 %v180, %v558
        %560 = vmatmul.mubr.f32.gmra.mrb[0].mxu0 %v559
        %v561 = vpop.f32.mrb[0].mxu0
        %v562 = vadd.f32 %v440, %v561
        %v563 = vpop.f32.mrb[0].mxu0
        %564 = vmatprep.mubr.f32.mxu0 0.0
        %v565 = vand.u32 %v183, 4294901760
        %v566 = vsub.f32 %v183, %v565
        %567 = vmatmul.mubr.f32.gmra.mrb[0].mxu0 %v566
        %v568 = vpop.f32.mrb[0].mxu0
        %v569 = vadd.f32 %v446, %v568
        %v570 = vpop.f32.mrb[0].mxu0
        %571 = vmatprep.mubr.f32.mxu0 0.0
        %v572 = vand.u32 %v186, 4294901760
        %v573 = vsub.f32 %v186, %v572
        %574 = vmatmul.mubr.f32.gmra.mrb[0].mxu0 %v573
        %v575 = vpop.f32.mrb[0].mxu0
        %v576 = vadd.f32 %v452, %v575
        %v577 = vpop.f32.mrb[0].mxu0
        %578 = vmatprep.mubr.f32.mxu0 0.0
        %v579 = vand.u32 %v189, 4294901760
        %v580 = vsub.f32 %v189, %v579
        %581 = vmatmul.mubr.f32.gmra.mrb[0].mxu0 %v580
        %v582 = vpop.f32.mrb[0].mxu0
        %v583 = vadd.f32 %v458, %v582
        %v584 = vpop.f32.mrb[0].mxu0
        %585 = vmatprep.mubr.f32.mxu0 0.0
        %v586 = vand.u32 %v192, 4294901760
        %v587 = vsub.f32 %v192, %v586
        %588 = vmatmul.mubr.f32.gmra.mrb[0].mxu0 %v587
        %v589 = vpop.f32.mrb[0].mxu0
        %v590 = vadd.f32 %v464, %v589
        %v591 = vpop.f32.mrb[0].mxu0
        %592 = vmatprep.mubr.f32.mxu0 0.0
        %v593 = vand.u32 %v195, 4294901760
        %v594 = vsub.f32 %v195, %v593
        %595 = vmatmul.mubr.f32.gmra.mrb[0].mxu0 %v594
        %v596 = vpop.f32.mrb[0].mxu0
        %v597 = vadd.f32 %v470, %v596
        %v598 = vpop.f32.mrb[0].mxu0
        %599 = vdwg.mxu0
        %600 = vmatprep.subr.mxu0 0.0
        %v601 = vand.u32 %v169, 4294901760
        %602 = vmatpush1.msra.mxu0 %v601
        %603 = vmatprep.subr.mxu0 0.0
        %v604 = vand.u32 %v170, 4294901760
        %605 = vmatpush1.msra.mxu0 %v604
        %606 = vmatprep.subr.mxu0 0.0
        %v607 = vand.u32 %v171, 4294901760
        %608 = vmatpush1.msra.mxu0 %v607
        %609 = vmatprep.subr.mxu0 0.0
        %610 = vmatpush1.msra.mxu0 0.0
        %611 = vmatprep.subr.mxu0 0.0
        %612 = vmatpush1.msra.mxu0 0.0
        %613 = vmatprep.subr.mxu0 0.0
        %614 = vmatpush1.msra.mxu0 0.0
        %615 = vmatprep.subr.mxu0 0.0
        %616 = vmatpush1.msra.mxu0 0.0
        %617 = vmatprep.subr.mxu0 0.0
        %618 = vmatpush1.msra.mxu0 0.0
        %619 = vmatprep.subr.mxu0 0.0
        %620 = vmatpush1.msra.mxu0 0.0
        %621 = vmatprep.subr.mxu0 0.0
        %622 = vmatpush1.msra.mxu0 0.0
        %623 = vmatprep.subr.mxu0 0.0
        %624 = vmatpush1.msra.mxu0 0.0
        %625 = vmatprep.subr.mxu0 0.0
        %626 = vmatpush1.msra.mxu0 0.0
        %627 = vmatprep.subr.mxu0 0.0
        %628 = vmatpush1.msra.mxu0 0.0
        %629 = vmatprep.subr.mxu0 0.0
        %630 = vmatpush1.msra.mxu0 0.0
        %631 = vmatprep.subr.mxu0 0.0
        %632 = vmatpush1.msra.mxu0 0.0
        %633 = vmatprep.subr.mxu0 0.0
        %634 = vmatpush1.msra.mxu0 0.0
        %635 = vmatprep.subr.mxu0 0.0
        %636 = vmatpush1.msra.mxu0 0.0
        %637 = vmatprep.subr.mxu0 0.0
        %638 = vmatpush1.msra.mxu0 0.0
        %639 = vmatprep.subr.mxu0 0.0
        %640 = vmatpush1.msra.mxu0 0.0
        %641 = vmatprep.subr.mxu0 0.0
        %642 = vmatpush1.msra.mxu0 0.0
        %643 = vmatprep.subr.mxu0 0.0
        %644 = vmatpush1.msra.mxu0 0.0
        %645 = vmatprep.subr.mxu0 0.0
        %646 = vmatpush1.msra.mxu0 0.0
        %647 = vmatprep.subr.mxu0 0.0
        %648 = vmatpush1.msra.mxu0 0.0
        %649 = vmatprep.subr.mxu0 0.0
        %650 = vmatpush1.msra.mxu0 0.0
        %651 = vmatprep.subr.mxu0 0.0
        %652 = vmatpush1.msra.mxu0 0.0
        %653 = vmatprep.subr.mxu0 0.0
        %654 = vmatpush1.msra.mxu0 0.0
        %655 = vmatprep.subr.mxu0 0.0
        %656 = vmatpush1.msra.mxu0 0.0
        %657 = vmatprep.subr.mxu0 0.0
        %658 = vmatpush1.msra.mxu0 0.0
        %659 = vmatprep.subr.mxu0 0.0
        %660 = vmatpush1.msra.mxu0 0.0
        %661 = vmatprep.subr.mxu0 0.0
        %662 = vmatpush1.msra.mxu0 0.0
        %663 = vmatprep.subr.mxu0 0.0
        %664 = vmatpush1.msra.mxu0 0.0
        %665 = vmatprep.subr.mxu0 0.0
        %666 = vmatpush1.msra.mxu0 0.0
        %667 = vmatprep.mubr.f32.mxu0 0.0
        %v668 = vand.u32 %v174, 4294901760
        %v669 = vsub.f32 %v174, %v668
        %v670 = vand.u32 %v669, 4294901760
        %671 = vmatmul.mubr.f32.gmra.mrb[0].mxu0 %v670
        %v672 = vpop.f32.mrb[0].mxu0
        %v673 = vadd.f32 %v548, %v672
        %v674 = vpop.f32.mrb[0].mxu0
        %675 = vmatprep.mubr.f32.mxu0 0.0
        %v676 = vand.u32 %v177, 4294901760
        %v677 = vsub.f32 %v177, %v676
        %v678 = vand.u32 %v677, 4294901760
        %679 = vmatmul.mubr.f32.gmra.mrb[0].mxu0 %v678
        %v680 = vpop.f32.mrb[0].mxu0
        %v681 = vadd.f32 %v555, %v680
        %v682 = vpop.f32.mrb[0].mxu0
        %683 = vmatprep.mubr.f32.mxu0 0.0
        %v684 = vand.u32 %v180, 4294901760
        %v685 = vsub.f32 %v180, %v684
        %v686 = vand.u32 %v685, 4294901760
        %687 = vmatmul.mubr.f32.gmra.mrb[0].mxu0 %v686
        %v688 = vpop.f32.mrb[0].mxu0
        %v689 = vadd.f32 %v562, %v688
        %v690 = vpop.f32.mrb[0].mxu0
        %691 = vmatprep.mubr.f32.mxu0 0.0
        %v692 = vand.u32 %v183, 4294901760
        %v693 = vsub.f32 %v183, %v692
        %v694 = vand.u32 %v693, 4294901760
        %695 = vmatmul.mubr.f32.gmra.mrb[0].mxu0 %v694
        %v696 = vpop.f32.mrb[0].mxu0
        %v697 = vadd.f32 %v569, %v696
        %v698 = vpop.f32.mrb[0].mxu0
        %699 = vmatprep.mubr.f32.mxu0 0.0
        %v700 = vand.u32 %v186, 4294901760
        %v701 = vsub.f32 %v186, %v700
        %v702 = vand.u32 %v701, 4294901760
        %703 = vmatmul.mubr.f32.gmra.mrb[0].mxu0 %v702
        %v704 = vpop.f32.mrb[0].mxu0
        %v705 = vadd.f32 %v576, %v704
        %v706 = vpop.f32.mrb[0].mxu0
        %707 = vmatprep.mubr.f32.mxu0 0.0
        %v708 = vand.u32 %v189, 4294901760
        %v709 = vsub.f32 %v189, %v708
        %v710 = vand.u32 %v709, 4294901760
        %711 = vmatmul.mubr.f32.gmra.mrb[0].mxu0 %v710
        %v712 = vpop.f32.mrb[0].mxu0
        %v713 = vadd.f32 %v583, %v712
        %v714 = vpop.f32.mrb[0].mxu0
        %715 = vmatprep.mubr.f32.mxu0 0.0
        %v716 = vand.u32 %v192, 4294901760
        %v717 = vsub.f32 %v192, %v716
        %v718 = vand.u32 %v717, 4294901760
        %719 = vmatmul.mubr.f32.gmra.mrb[0].mxu0 %v718
        %v720 = vpop.f32.mrb[0].mxu0
        %v721 = vadd.f32 %v590, %v720
        %v722 = vpop.f32.mrb[0].mxu0
        %723 = vmatprep.mubr.f32.mxu0 0.0
        %v724 = vand.u32 %v195, 4294901760
        %v725 = vsub.f32 %v195, %v724
        %v726 = vand.u32 %v725, 4294901760
        %727 = vmatmul.mubr.f32.gmra.mrb[0].mxu0 %v726
        %v728 = vpop.f32.mrb[0].mxu0
        %v729 = vadd.f32 %v597, %v728
        %v730 = vpop.f32.mrb[0].mxu0
        %731 = vdwg.mxu0
        %732 = vmatprep.subr.mxu0 0.0
        %v733 = vand.u32 %v169, 4294901760
        %v734 = vsub.f32 %v169, %v733
        %v735 = vand.u32 %v734, 4294901760
        %736 = vmatpush1.msra.mxu0 %v735
        %737 = vmatprep.subr.mxu0 0.0
        %v738 = vand.u32 %v170, 4294901760
        %v739 = vsub.f32 %v170, %v738
        %v740 = vand.u32 %v739, 4294901760
        %741 = vmatpush1.msra.mxu0 %v740
        %742 = vmatprep.subr.mxu0 0.0
        %v743 = vand.u32 %v171, 4294901760
        %v744 = vsub.f32 %v171, %v743
        %v745 = vand.u32 %v744, 4294901760
        %746 = vmatpush1.msra.mxu0 %v745
        %747 = vmatprep.subr.mxu0 0.0
        %748 = vmatpush1.msra.mxu0 0.0
        %749 = vmatprep.subr.mxu0 0.0
        %750 = vmatpush1.msra.mxu0 0.0
        %751 = vmatprep.subr.mxu0 0.0
        %752 = vmatpush1.msra.mxu0 0.0
        %753 = vmatprep.subr.mxu0 0.0
        %754 = vmatpush1.msra.mxu0 0.0
        %755 = vmatprep.subr.mxu0 0.0
        %756 = vmatpush1.msra.mxu0 0.0
        %757 = vmatprep.subr.mxu0 0.0
        %758 = vmatpush1.msra.mxu0 0.0
        %759 = vmatprep.subr.mxu0 0.0
        %760 = vmatpush1.msra.mxu0 0.0
        %761 = vmatprep.subr.mxu0 0.0
        %762 = vmatpush1.msra.mxu0 0.0
        %763 = vmatprep.subr.mxu0 0.0
        %764 = vmatpush1.msra.mxu0 0.0
        %765 = vmatprep.subr.mxu0 0.0
        %766 = vmatpush1.msra.mxu0 0.0
        %767 = vmatprep.subr.mxu0 0.0
        %768 = vmatpush1.msra.mxu0 0.0
        %769 = vmatprep.subr.mxu0 0.0
        %770 = vmatpush1.msra.mxu0 0.0
        %771 = vmatprep.subr.mxu0 0.0
        %772 = vmatpush1.msra.mxu0 0.0
        %773 = vmatprep.subr.mxu0 0.0
        %774 = vmatpush1.msra.mxu0 0.0
        %775 = vmatprep.subr.mxu0 0.0
        %776 = vmatpush1.msra.mxu0 0.0
        %777 = vmatprep.subr.mxu0 0.0
        %778 = vmatpush1.msra.mxu0 0.0
        %779 = vmatprep.subr.mxu0 0.0
        %780 = vmatpush1.msra.mxu0 0.0
        %781 = vmatprep.subr.mxu0 0.0
        %782 = vmatpush1.msra.mxu0 0.0
        %783 = vmatprep.subr.mxu0 0.0
        %784 = vmatpush1.msra.mxu0 0.0
        %785 = vmatprep.subr.mxu0 0.0
        %786 = vmatpush1.msra.mxu0 0.0
        %787 = vmatprep.subr.mxu0 0.0
        %788 = vmatpush1.msra.mxu0 0.0
        %789 = vmatprep.subr.mxu0 0.0
        %790 = vmatpush1.msra.mxu0 0.0
        %791 = vmatprep.subr.mxu0 0.0
        %792 = vmatpush1.msra.mxu0 0.0
        %793 = vmatprep.subr.mxu0 0.0
        %794 = vmatpush1.msra.mxu0 0.0
        %795 = vmatprep.subr.mxu0 0.0
        %796 = vmatpush1.msra.mxu0 0.0
        %797 = vmatprep.subr.mxu0 0.0
        %798 = vmatpush1.msra.mxu0 0.0
        %799 = vmatprep.subr.mxu0 0.0
        %800 = vmatpush1.msra.mxu0 0.0
        %801 = vmatprep.subr.mxu0 0.0
        %802 = vmatpush1.msra.mxu0 0.0
        %803 = vmatprep.subr.mxu0 0.0
        %804 = vmatpush1.msra.mxu0 0.0
        %805 = vmatprep.mubr.f32.mxu0 0.0
        %v806 = vand.u32 %v174, 4294901760
        %807 = vmatmul.mubr.f32.gmra.mrb[0].mxu0 %v806
        %v808 = vpop.f32.mrb[0].mxu0
        %v809 = vadd.f32 %v673, %v808
        %v810 = vpop.f32.mrb[0].mxu0
        %811 = vmatprep.mubr.f32.mxu0 0.0
        %v812 = vand.u32 %v177, 4294901760
        %813 = vmatmul.mubr.f32.gmra.mrb[0].mxu0 %v812
        %v814 = vpop.f32.mrb[0].mxu0
        %v815 = vadd.f32 %v681, %v814
        %v816 = vpop.f32.mrb[0].mxu0
        %817 = vmatprep.mubr.f32.mxu0 0.0
        %v818 = vand.u32 %v180, 4294901760
        %819 = vmatmul.mubr.f32.gmra.mrb[0].mxu0 %v818
        %v820 = vpop.f32.mrb[0].mxu0
        %v821 = vadd.f32 %v689, %v820
        %v822 = vpop.f32.mrb[0].mxu0
        %823 = vmatprep.mubr.f32.mxu0 0.0
        %v824 = vand.u32 %v183, 4294901760
        %825 = vmatmul.mubr.f32.gmra.mrb[0].mxu0 %v824
        %v826 = vpop.f32.mrb[0].mxu0
        %v827 = vadd.f32 %v697, %v826
        %v828 = vpop.f32.mrb[0].mxu0
        %829 = vmatprep.mubr.f32.mxu0 0.0
        %v830 = vand.u32 %v186, 4294901760
        %831 = vmatmul.mubr.f32.gmra.mrb[0].mxu0 %v830
        %v832 = vpop.f32.mrb[0].mxu0
        %v833 = vadd.f32 %v705, %v832
        %v834 = vpop.f32.mrb[0].mxu0
        %835 = vmatprep.mubr.f32.mxu0 0.0
        %v836 = vand.u32 %v189, 4294901760
        %837 = vmatmul.mubr.f32.gmra.mrb[0].mxu0 %v836
        %v838 = vpop.f32.mrb[0].mxu0
        %v839 = vadd.f32 %v713, %v838
        %v840 = vpop.f32.mrb[0].mxu0
        %841 = vmatprep.mubr.f32.mxu0 0.0
        %v842 = vand.u32 %v192, 4294901760
        %843 = vmatmul.mubr.f32.gmra.mrb[0].mxu0 %v842
        %v844 = vpop.f32.mrb[0].mxu0
        %v845 = vadd.f32 %v721, %v844
        %v846 = vpop.f32.mrb[0].mxu0
        %847 = vmatprep.mubr.f32.mxu0 0.0
        %v848 = vand.u32 %v195, 4294901760
        %849 = vmatmul.mubr.f32.gmra.mrb[0].mxu0 %v848
        %v850 = vpop.f32.mrb[0].mxu0
        %v851 = vadd.f32 %v729, %v850
        %v852 = vpop.f32.mrb[0].mxu0
        %853 = vdwg.mxu0
        %854 = vmatprep.subr.mxu0 0.0
        %v855 = vand.u32 %v169, 4294901760
        %856 = vmatpush1.msra.mxu0 %v855
        %857 = vmatprep.subr.mxu0 0.0
        %v858 = vand.u32 %v170, 4294901760
        %859 = vmatpush1.msra.mxu0 %v858
        %860 = vmatprep.subr.mxu0 0.0
        %v861 = vand.u32 %v171, 4294901760
        %862 = vmatpush1.msra.mxu0 %v861
        %863 = vmatprep.subr.mxu0 0.0
        %864 = vmatpush1.msra.mxu0 0.0
        %865 = vmatprep.subr.mxu0 0.0
        %866 = vmatpush1.msra.mxu0 0.0
        %867 = vmatprep.subr.mxu0 0.0
        %868 = vmatpush1.msra.mxu0 0.0
        %869 = vmatprep.subr.mxu0 0.0
        %870 = vmatpush1.msra.mxu0 0.0
        %871 = vmatprep.subr.mxu0 0.0
        %872 = vmatpush1.msra.mxu0 0.0
        %873 = vmatprep.subr.mxu0 0.0
        %874 = vmatpush1.msra.mxu0 0.0
        %875 = vmatprep.subr.mxu0 0.0
        %876 = vmatpush1.msra.mxu0 0.0
        %877 = vmatprep.subr.mxu0 0.0
        %878 = vmatpush1.msra.mxu0 0.0
        %879 = vmatprep.subr.mxu0 0.0
        %880 = vmatpush1.msra.mxu0 0.0
        %881 = vmatprep.subr.mxu0 0.0
        %882 = vmatpush1.msra.mxu0 0.0
        %883 = vmatprep.subr.mxu0 0.0
        %884 = vmatpush1.msra.mxu0 0.0
        %885 = vmatprep.subr.mxu0 0.0
        %886 = vmatpush1.msra.mxu0 0.0
        %887 = vmatprep.subr.mxu0 0.0
        %888 = vmatpush1.msra.mxu0 0.0
        %889 = vmatprep.subr.mxu0 0.0
        %890 = vmatpush1.msra.mxu0 0.0
        %891 = vmatprep.subr.mxu0 0.0
        %892 = vmatpush1.msra.mxu0 0.0
        %893 = vmatprep.subr.mxu0 0.0
        %894 = vmatpush1.msra.mxu0 0.0
        %895 = vmatprep.subr.mxu0 0.0
        %896 = vmatpush1.msra.mxu0 0.0
        %897 = vmatprep.subr.mxu0 0.0
        %898 = vmatpush1.msra.mxu0 0.0
        %899 = vmatprep.subr.mxu0 0.0
        %900 = vmatpush1.msra.mxu0 0.0
        %901 = vmatprep.subr.mxu0 0.0
        %902 = vmatpush1.msra.mxu0 0.0
        %903 = vmatprep.subr.mxu0 0.0
        %904 = vmatpush1.msra.mxu0 0.0
        %905 = vmatprep.subr.mxu0 0.0
        %906 = vmatpush1.msra.mxu0 0.0
        %907 = vmatprep.subr.mxu0 0.0
        %908 = vmatpush1.msra.mxu0 0.0
        %909 = vmatprep.subr.mxu0 0.0
        %910 = vmatpush1.msra.mxu0 0.0
        %911 = vmatprep.subr.mxu0 0.0
        %912 = vmatpush1.msra.mxu0 0.0
        %913 = vmatprep.subr.mxu0 0.0
        %914 = vmatpush1.msra.mxu0 0.0
        %915 = vmatprep.subr.mxu0 0.0
        %916 = vmatpush1.msra.mxu0 0.0
        %917 = vmatprep.subr.mxu0 0.0
        %918 = vmatpush1.msra.mxu0 0.0
        %919 = vmatprep.subr.mxu0 0.0
        %920 = vmatpush1.msra.mxu0 0.0
        %921 = vmatprep.mubr.f32.mxu0 0.0
        %v922 = vand.u32 %v174, 4294901760
        %923 = vmatmul.mubr.f32.gmra.mrb[0].mxu0 %v922
        %v924 = vpop.f32.mrb[0].mxu0
        %v925 = vadd.f32 %v809, %v924
        %v926 = vpop.f32.mrb[0].mxu0
        %927 = vmatprep.mubr.f32.mxu0 0.0
        %v928 = vand.u32 %v177, 4294901760
        %929 = vmatmul.mubr.f32.gmra.mrb[0].mxu0 %v928
        %v930 = vpop.f32.mrb[0].mxu0
        %v931 = vadd.f32 %v815, %v930
        %v932 = vpop.f32.mrb[0].mxu0
        %933 = vmatprep.mubr.f32.mxu0 0.0
        %v934 = vand.u32 %v180, 4294901760
        %935 = vmatmul.mubr.f32.gmra.mrb[0].mxu0 %v934
        %v936 = vpop.f32.mrb[0].mxu0
        %v937 = vadd.f32 %v821, %v936
        %v938 = vpop.f32.mrb[0].mxu0
        %939 = vmatprep.mubr.f32.mxu0 0.0
        %v940 = vand.u32 %v183, 4294901760
        %941 = vmatmul.mubr.f32.gmra.mrb[0].mxu0 %v940
        %v942 = vpop.f32.mrb[0].mxu0
        %v943 = vadd.f32 %v827, %v942
        %v944 = vpop.f32.mrb[0].mxu0
        %945 = vmatprep.mubr.f32.mxu0 0.0
        %v946 = vand.u32 %v186, 4294901760
        %947 = vmatmul.mubr.f32.gmra.mrb[0].mxu0 %v946
        %v948 = vpop.f32.mrb[0].mxu0
        %v949 = vadd.f32 %v833, %v948
        %v950 = vpop.f32.mrb[0].mxu0
        %951 = vmatprep.mubr.f32.mxu0 0.0
        %v952 = vand.u32 %v189, 4294901760
        %953 = vmatmul.mubr.f32.gmra.mrb[0].mxu0 %v952
        %v954 = vpop.f32.mrb[0].mxu0
        %v955 = vadd.f32 %v839, %v954
        %v956 = vpop.f32.mrb[0].mxu0
        %957 = vmatprep.mubr.f32.mxu0 0.0
        %v958 = vand.u32 %v192, 4294901760
        %959 = vmatmul.mubr.f32.gmra.mrb[0].mxu0 %v958
        %v960 = vpop.f32.mrb[0].mxu0
        %v961 = vadd.f32 %v845, %v960
        %v962 = vpop.f32.mrb[0].mxu0
        %963 = vmatprep.mubr.f32.mxu0 0.0
        %v964 = vand.u32 %v195, 4294901760
        %965 = vmatmul.mubr.f32.gmra.mrb[0].mxu0 %v964
        %v966 = vpop.f32.mrb[0].mxu0
        %v967 = vadd.f32 %v851, %v966
        %v968 = vpop.f32.mrb[0].mxu0
        %969 = vdwg.mxu0
        %vm970 = vcmask 130048
        %971 = vst.msk [vmem:[%s141] sm:$0xff] %vm970, %v925
        %972 = vst.msk [vmem:[%s141 + $0x8] sm:$0xff] %vm970, %v931
        %973 = vst.msk [vmem:[%s141 + $0x10] sm:$0xff] %vm970, %v937
        %974 = vst.msk [vmem:[%s141 + $0x18] sm:$0xff] %vm970, %v943
        %975 = vst.msk [vmem:[%s141 + $0x20] sm:$0xff] %vm970, %v949
        %976 = vst.msk [vmem:[%s141 + $0x28] sm:$0xff] %vm970, %v955
        %977 = vst.msk [vmem:[%s141 + $0x30] sm:$0xff] %vm970, %v961
        %978 = vst.msk [vmem:[%s141 + $0x38] sm:$0xff] %vm970, %v967
        %p979 = scmp.lt.s32.totalorder %s20, 1
        %s980 = scalar_select %p979, %s20, 1
        %s981 = smul.addr %s980, 8
        %s982 = smul.addr %s981, 8
        %s983 = scalar_lea.vmem %s2, %s982
        // Predicated region
        $region29: #{tpu_custom_call.1} parent=23 // pred_check
          %p984 = pneg %p64
        $region30: #{tpu_custom_call.1} parent=23 // pred_check_branch
          %986 = sbr.rel (%p984) target = $region32
        $region31: #{tpu_custom_call.1} parent=23 // pred_region
          _
        $region32: #{tpu_custom_call.1} parent=23 // pred_fallthru
          _
      $region24: #{tpu_custom_call.1} parent=5 // pred_fallthru
        _
      %p987 = scmp.le.s32.totalorder 2, %s15
      // Predicated region
      $region33: #{tpu_custom_call.1} parent=5 // pred_check
        %p988 = pneg %p987
      $region34: #{tpu_custom_call.1} parent=5 // pred_check_branch
        %990 = sbr.rel (%p988) target = $region36
      $region35: #{tpu_custom_call.1} parent=5 // pred_region
        %s991 = ssub.s32 %s15, 2
        // Predicated region
        $region37: #{tpu_custom_call.1} parent=35 // pred_check
          %p992 = pneg %p70
        $region38: #{tpu_custom_call.1} parent=35 // pred_check_branch
          %994 = sbr.rel (%p992) target = $region40
        $region39: #{tpu_custom_call.1} parent=35 // pred_region
          %p995 = scmp.lt.s32.totalorder %s21, 1
          %s996 = scalar_select %p995, %s21, 1
          %s997 = smul.addr %s996, 8
          %s998 = smul.addr %s997, 8
          %s999 = scalar_lea.vmem %s2, %s998
        $region40: #{tpu_custom_call.1} parent=35 // pred_fallthru
          _
      $region36: #{tpu_custom_call.1} parent=5 // pred_fallthru
        _
    $region6: #{tpu_custom_call.1} parent=1 // loop_footer
      %s19 = sadd.s32 1, %s15
    $region7: #{tpu_custom_call.1} parent=1 // loop_footer_branch
      %14 = sbr.rel target = $region3
    $region8: #{tpu_custom_call.1} parent=1 // loop_exit
      _
    %1000 = vsyncpa [#allocation5], 1
    %s1001 = scalar_lea.sflag [#allocation5], 1
    %1002 = vsyncpa %s1001, 1

</llo_original>
